<compile_context>
chip_gen: v5e
topology: v5e:2x2
jax: 0.10.0
libtpu: 0.0.40
codegen_flags: <defaults>
</compile_context>

<pallas_src>
import functools

import jax
import jax.numpy as jnp
from jax.experimental import pallas as pl
from jax.experimental.pallas import tpu as pltpu

_BN_EPS = 1e-5
_NEG_SLOPE = 0.2
_LANE = 128


def _round_up(v, m):
    return (v + m - 1) // m * m


def _row_align(*dtypes):
    # Sublane packing: f32 -> 8 rows, bf16 -> 16, int8/fp8 -> 32.
    return max(max(8, 32 // jnp.dtype(d).itemsize) for d in dtypes)


def _vmem_budget_bytes():
    """Generation-aware VMEM limit: physical capacity minus headroom for Mosaic scratch."""
    cap = 64 * 1024 * 1024  # conservative fallback (v7x physical per-TC VMEM)
    try:
        cap = int(pltpu.get_tpu_info().vmem_capacity_bytes)
    except Exception:
        pass
    # v5e/v6e (128 MiB) -> 96 MiB; v7x (64 MiB) -> 48 MiB.
    return int(max(cap - 32 * 1024 * 1024, cap * 3 // 4))


# --------------------------------------------------------------------------------------
# Kernels
# --------------------------------------------------------------------------------------
def _fused_kernel(x_ref, w_ref, b_ref, o_ref, *, compute_dtype):
    """leaky_relu(x @ W' + b') with BN folded into W'/b'; f32 accumulation, f32 epilogue."""
    y = jnp.dot(x_ref[...].astype(compute_dtype), w_ref[...],
                preferred_element_type=jnp.float32)
    y = y + b_ref[...]
    # LeakyReLU(0.2): max(y, 0.2*y) is exact for 0 < slope < 1.
    o_ref[...] = jnp.maximum(y, _NEG_SLOPE * y).astype(o_ref.dtype)


def _fused_kernel_ktiled(x_ref, w_ref, b_ref, o_ref, acc_ref, *, compute_dtype):
    """Same op with the reduction (d_points) axis tiled; accumulator in f32 VMEM scratch."""
    k = pl.program_id(2)

    @pl.when(k == 0)
    def _init():
        acc_ref[...] = jnp.zeros_like(acc_ref)

    acc_ref[...] += jnp.dot(x_ref[...].astype(compute_dtype), w_ref[...],
                            preferred_element_type=jnp.float32)

    @pl.when(k == pl.num_programs(2) - 1)
    def _finalize():
        y = acc_ref[...] + b_ref[...]
        o_ref[...] = jnp.maximum(y, _NEG_SLOPE * y).astype(o_ref.dtype)


# --------------------------------------------------------------------------------------
# Parameter preparation (do once per checkpoint and cache)
# --------------------------------------------------------------------------------------
def prepare_mlp_block_fc_params(weight, gamma, beta, running_mean, running_var,
                                *, compute_dtype=jnp.bfloat16):
    """Fold eval-mode BatchNorm1d into the transposed Linear weight + bias, pad & cast.

    weight: [d_model, d_points]  (PyTorch nn.Linear layout).
    Returns a dict with the folded weight in compute_dtype ([d_points, Mp], Mp lane-padded),
    an f32 bias [1, Mp], and the original d_model.
    """
    d_model = weight.shape[0]
    scale = gamma.astype(jnp.float32) * jax.lax.rsqrt(
        running_var.astype(jnp.float32) + _BN_EPS)                       # [d_model]
    w_fold = weight.astype(jnp.float32).T * scale[None, :]               # [d_points, d_model]
    b_fold = beta.astype(jnp.float32) - running_mean.astype(jnp.float32) * scale

    mp = _round_up(d_model, _LANE)
    if mp != d_model:
        w_fold = jnp.pad(w_fold, ((0, 0), (0, mp - d_model)))
        b_fold = jnp.pad(b_fold, (0, mp - d_model))

    return {
        "w": w_fold.astype(compute_dtype),         # [d_points, Mp]
        "b": b_fold.reshape(1, mp),                # f32: the epilogue stays in f32
        "d_model": int(d_model),
        "compute_dtype": jnp.dtype(compute_dtype),
    }


# --------------------------------------------------------------------------------------
# Forward
# --------------------------------------------------------------------------------------
def mlp_block_fc_apply(x, params, *, block_rows=512, block_cols=1024, block_k=None,
                       out_dtype=None):
    """x: [N, d_points] -> leaky_relu(BN(x @ W^T)) : [N, d_model] (eval mode, Dropout=id)."""
    w = params["w"]
    b = params["b"]
    d_model = params["d_model"]
    compute_dtype = params["compute_dtype"]

    N, K = x.shape
    Kw, Mp = w.shape
    if Kw != K:
        raise ValueError(f"x feature dim {K} != prepared weight dim {Kw}")

    out_dtype = jnp.dtype(compute_dtype if out_dtype is None else out_dtype)

    # ---- tile sizes --------------------------------------------------------
    align = _row_align(compute_dtype, out_dtype)
    bn = _round_up(min(block_rows, _round_up(N, align)), align)
    tn = _round_up(min(block_cols, Mp), _LANE)

    # K (d_points) tiling: only when the reduction dim is large enough that full-K
    # x/W slabs would strain VMEM (matters most on v7x's 64 MiB).
    if block_k is None:
        tk = K if K <= 2048 else 2048
    else:
        tk = min(_round_up(block_k, _LANE), _round_up(K, _LANE))
    k_tiled = tk < K
    if not k_tiled:
        tk = K

    # ---- fit the double-buffered working set under the VMEM budget ---------
    budget = _vmem_budget_bytes()
    x_item = jnp.dtype(x.dtype).itemsize
    w_item = jnp.dtype(compute_dtype).itemsize
    o_item = out_dtype.itemsize

    def working_set(bn_, tn_):
        ws = 2 * (bn_ * tk * x_item + tk * tn_ * w_item + tn_ * 4 + bn_ * tn_ * o_item)
        if k_tiled:
            ws += bn_ * tn_ * 4  # single-buffered f32 accumulator scratch
        return ws

    while working_set(bn, tn) > budget and bn > align:
        bn = max(align, _round_up(bn // 2, align))
    while working_set(bn, tn) > budget and tn > _LANE:
        tn = max(_LANE, _round_up(tn // 2, _LANE))

    # ---- padded problem sizes ----------------------------------------------
    Np = _round_up(N, bn)
    Mpp = _round_up(Mp, tn)
    Kp = _round_up(K, tk) if k_tiled else K

    n_row, n_col = Np // bn, Mpp // tn
    n_k = Kp // tk

    if Mpp != Mp:
        w = jnp.pad(w, ((0, 0), (0, Mpp - Mp)))
        b = jnp.pad(b, ((0, 0), (0, Mpp - Mp)))
    if Kp != K:
        w = jnp.pad(w, ((0, Kp - K), (0, 0)))

    # ---- grid order: keep the operand with the most re-use resident --------
    # More row blocks than column blocks (large N, modest d_model) -> d_model OUTER,
    # so the (tk, tn) W slab only changes on the outer axis and W is streamed from HBM
    # exactly once; x/out stream on the inner axis.  Otherwise rows stay outer and x
    # streams exactly once while W streams n_row times.
    w_resident = n_row >= n_col

    if k_tiled:
        if w_resident:
            grid = (n_col, n_row, n_k)
            x_map = lambda j, i, k: (i, k)
            w_map = lambda j, i, k: (k, j)
            b_map = lambda j, i, k: (0, j)
            o_map = lambda j, i, k: (i, j)
        else:
            grid = (n_row, n_col, n_k)
            x_map = lambda i, j, k: (i, k)
            w_map = lambda i, j, k: (k, j)
            b_map = lambda i, j, k: (0, j)
            o_map = lambda i, j, k: (i, j)
        dim_sem = ("parallel", "parallel", "arbitrary")
        kernel = functools.partial(_fused_kernel_ktiled, compute_dtype=compute_dtype)
        scratch = [pltpu.VMEM((bn, tn), jnp.float32)]
    else:
        if w_resident:
            grid = (n_col, n_row)
            x_map = lambda j, i: (i, 0)
            w_map = lambda j, i: (0, j)
            b_map = lambda j, i: (0, j)
            o_map = lambda j, i: (i, j)
        else:
            grid = (n_row, n_col)
            x_map = lambda i, j: (i, 0)
            w_map = lambda i, j: (0, j)
            b_map = lambda i, j: (0, j)
            o_map = lambda i, j: (i, j)
        dim_sem = ("parallel", "parallel")
        kernel = functools.partial(_fused_kernel, compute_dtype=compute_dtype)
        scratch = []

    # x is cast in-kernel (VPU) unless it is re-streamed many times, in which case a
    # single wrapper-side down-cast pays for itself.
    x_streams = n_col if w_resident else 1
    pre_cast = (x_streams >= 4
                and jnp.dtype(compute_dtype).itemsize < x_item)

    x_p = x
    if Np != N or Kp != K:
        x_p = jnp.pad(x_p, ((0, Np - N), (0, Kp - K)))
    if pre_cast:
        x_p = x_p.astype(compute_dtype)

    # ---- accurate cost estimate (advisory) ----------------------------------
    x_fed_item = jnp.dtype(x_p.dtype).itemsize
    cost = pl.CostEstimate(
        flops=2 * Np * Kp * Mpp,
        transcendentals=0,
        bytes_accessed=(Np * Kp * x_fed_item * x_streams
                        + Kp * Mpp * w_item * (1 if w_resident else n_row)
                        + Mpp * 4
                        + Np * Mpp * o_item),
    )

    out_p = pl.pallas_call(
        kernel,
        out_shape=jax.ShapeDtypeStruct((Np, Mpp), out_dtype),
        grid_spec=pltpu.PrefetchScalarGridSpec(
            num_scalar_prefetch=0,
            grid=grid,
            in_specs=[
                pl.BlockSpec((bn, tk), x_map),   # x row(/K) tile
                pl.BlockSpec((tk, tn), w_map),   # folded-W slab (resident when w_resident)
                pl.BlockSpec((1, tn), b_map),    # folded bias (f32)
            ],
            out_specs=pl.BlockSpec((bn, tn), o_map),
            scratch_shapes=scratch,
        ),
        compiler_params=pltpu.CompilerParams(
            dimension_semantics=dim_sem,
            vmem_limit_bytes=budget,
        ),
        cost_estimate=cost,
    )(x_p, w, b)

    return out_p[:N, :d_model]


def mlp_block_fc(x, weight, gamma, beta, running_mean, running_var, *,
                 p_dropout=0.0, block_rows=512, block_cols=1024, block_k=None,
                 compute_dtype=jnp.bfloat16, out_dtype=None):
    """One-shot convenience wrapper.  For repeated calls with a fixed checkpoint, call
    prepare_mlp_block_fc_params() once and reuse it with mlp_block_fc_apply()."""
    del p_dropout  # eval mode: Dropout is identity
    params = prepare_mlp_block_fc_params(weight, gamma, beta, running_mean, running_var,
                                         compute_dtype=compute_dtype)
    return mlp_block_fc_apply(x, params, block_rows=block_rows, block_cols=block_cols,
                              block_k=block_k, out_dtype=out_dtype)


def reference(x, weight, gamma, beta, running_mean, running_var):
    """Textbook eval-mode math in f32 (highest matmul precision)."""
    y = jnp.dot(x, weight.T, precision=jax.lax.Precision.HIGHEST)
    y = (y - running_mean) / jnp.sqrt(running_var + _BN_EPS) * gamma + beta
    return jnp.where(y > 0, y, _NEG_SLOPE * y)


if __name__ == "__main__":
    key = jax.random.PRNGKey(0)

    # ---------------- Case 1: f32 compute + f32 output, tiny shapes ----------------
    # Exercises row padding (20 -> 24), d_model lane padding (32 -> 128) and a
    # multi-row-block grid with the W-resident (d_model-outer) ordering.
    d_points, d_model, N = 16, 32, 20
    kx, kw, kg, kb = jax.random.split(key, 4)
    x = jax.random.normal(kx, (N, d_points), dtype=jnp.float32)
    weight = jax.random.normal(kw, (d_model, d_points), dtype=jnp.float32) * 0.1  # nn.Linear layout
    gamma = 1.0 + 0.1 * jax.random.normal(kg, (d_model,), dtype=jnp.float32)
    beta = 0.1 * jax.random.normal(kb, (d_model,), dtype=jnp.float32)
    running_mean = 0.05 * jnp.arange(d_model, dtype=jnp.float32) / d_model
    running_var = 1.0 + 0.1 * jnp.arange(d_model, dtype=jnp.float32) / d_model

    params_f32 = prepare_mlp_block_fc_params(weight, gamma, beta, running_mean, running_var,
                                             compute_dtype=jnp.float32)
    out_f32 = mlp_block_fc_apply(x, params_f32, block_rows=8, out_dtype=jnp.float32)
    out_f32 = jax.block_until_ready(out_f32)
    assert out_f32.shape == (N, d_model)

    # Tight plumbing check against plain JAX on the *same folded* operands.
    wf = params_f32["w"][:, :d_model]
    bf = params_f32["b"][0, :d_model]
    yt = jnp.dot(x, wf) + bf
    tight_ref = jnp.maximum(yt, _NEG_SLOPE * yt)
    assert jnp.allclose(out_f32, tight_ref, atol=1e-5, rtol=1e-5), "f32 path mismatch"

    ref = reference(x, weight, gamma, beta, running_mean, running_var)
    assert jnp.allclose(out_f32, ref, atol=1e-2, rtol=1e-2), "f32 vs textbook mismatch"

    # ---------------- Case 2: K-tiled accumulator path (block_k < d_points) --------
    d_points2, d_model2, N2 = 256, 64, 48
    k2x, k2w, k2g, k2b = jax.random.split(jax.random.PRNGKey(1), 4)
    x2 = jax.random.normal(k2x, (N2, d_points2), dtype=jnp.float32)
    weight2 = jax.random.normal(k2w, (d_model2, d_points2), dtype=jnp.float32) * 0.1
    gamma2 = 1.0 + 0.1 * jax.random.normal(k2g, (d_model2,), dtype=jnp.float32)
    beta2 = 0.1 * jax.random.normal(k2b, (d_model2,), dtype=jnp.float32)
    mean2 = 0.05 * jnp.arange(d_model2, dtype=jnp.float32) / d_model2
    var2 = 1.0 + 0.1 * jnp.arange(d_model2, dtype=jnp.float32) / d_model2

    params2 = prepare_mlp_block_fc_params(weight2, gamma2, beta2, mean2, var2,
                                          compute_dtype=jnp.float32)
    out_kt = mlp_block_fc_apply(x2, params2, block_rows=16, block_cols=128,
                                block_k=128, out_dtype=jnp.float32)
    out_kt = jax.block_until_ready(out_kt)
    assert out_kt.shape == (N2, d_model2)
    ref2 = reference(x2, weight2, gamma2, beta2, mean2, var2)
    assert jnp.allclose(out_kt, ref2, atol=2e-2, rtol=2e-2), "K-tiled path mismatch"

    # ---------------- Case 3: production defaults (bf16 compute + bf16 output) -----
    out_bf16 = mlp_block_fc(x, weight, gamma, beta, running_mean, running_var)
    out_bf16 = jax.block_until_ready(out_bf16)
    assert out_bf16.shape == (N, d_model)
    assert out_bf16.dtype == jnp.bfloat16
    assert jnp.allclose(out_bf16.astype(jnp.float32), ref, atol=5e-2, rtol=5e-2), \
        "bf16 path mismatch"

    print("KERNEL_OK")
</pallas_src>

<mosaic_0001>
module attributes {stable_mosaic.version = 11 : i64} {
  func.func @_fused_kernel(%arg0: i32, %arg1: i32, %arg2: memref<8x16xf32, #tpu.memory_space<vmem>>, %arg3: memref<16x128xf32, #tpu.memory_space<vmem>>, %arg4: memref<1x128xf32, #tpu.memory_space<vmem>>, %arg5: memref<8x128xf32, #tpu.memory_space<vmem>>) attributes {dimension_semantics = [#tpu.dimension_semantics<parallel>, #tpu.dimension_semantics<parallel>], iteration_bounds = array<i64: 1, 3>, scalar_prefetch = 0 : i64, scratch_operands = 0 : i64, tpu.core_type = #tpu.core_type<tc>, window_params = [{transform_indices = @transform_0, window_bounds = array<i64: 8, 16>}, {transform_indices = @transform_1, window_bounds = array<i64: 16, 128>}, {transform_indices = @transform_2, window_bounds = array<i64: 1, 128>}, {transform_indices = @transform_3, window_bounds = array<i64: 8, 128>}]} {
    %c0 = arith.constant 0 : index
    %c0_0 = arith.constant 0 : index
    %0 = vector.load %arg2[%c0, %c0_0] : memref<8x16xf32, #tpu.memory_space<vmem>>, vector<8x16xf32>
    %c0_1 = arith.constant 0 : index
    %c0_2 = arith.constant 0 : index
    %1 = vector.load %arg3[%c0_1, %c0_2] : memref<16x128xf32, #tpu.memory_space<vmem>>, vector<16x128xf32>
    %cst = arith.constant dense<0.000000e+00> : vector<8x128xf32>
    %2 = tpu.matmul %0, %1, %cst {dimension_numbers = #tpu.dot_dimension_numbers<[1], [0], [0], [1], [0, 0, 1, 1], [], []>} : vector<8x16xf32>, vector<16x128xf32>, vector<8x128xf32> -> vector<8x128xf32>
    %c0_3 = arith.constant 0 : index
    %c0_4 = arith.constant 0 : index
    %3 = vector.load %arg4[%c0_3, %c0_4] : memref<1x128xf32, #tpu.memory_space<vmem>>, vector<1x128xf32>
    %4 = vector.broadcast %3 : vector<1x128xf32> to vector<8x128xf32>
    %5 = arith.addf %2, %4 : vector<8x128xf32>
    %cst_5 = arith.constant 2.000000e-01 : f32
    %6 = vector.broadcast %cst_5 : f32 to vector<8x128xf32>
    %7 = arith.mulf %6, %5 : vector<8x128xf32>
    %8 = arith.maximumf %5, %7 : vector<8x128xf32>
    %c0_6 = arith.constant 0 : index
    %c0_7 = arith.constant 0 : index
    %9 = vector.load %arg5[%c0_6, %c0_7] : memref<8x128xf32, #tpu.memory_space<vmem>>, vector<8x128xf32>
    tpu.vector_store %arg5[%c0_6, %c0_7], %8 {strides = array<i32>} : memref<8x128xf32, #tpu.memory_space<vmem>>, vector<8x128xf32>,
    return
  }
  func.func @transform_0(%arg0: i32, %arg1: i32) -> (i32, i32) {
    %c0_i32 = arith.constant 0 : i32
    %c0_i32_0 = arith.constant 0 : i32
    return %arg1, %c0_i32 : i32, i32
  }
  func.func @transform_1(%arg0: i32, %arg1: i32) -> (i32, i32) {
    %c0_i32 = arith.constant 0 : i32
    %c0_i32_0 = arith.constant 0 : i32
    return %c0_i32, %arg0 : i32, i32
  }
  func.func @transform_2(%arg0: i32, %arg1: i32) -> (i32, i32) {
    %c0_i32 = arith.constant 0 : i32
    %c0_i32_0 = arith.constant 0 : i32
    return %c0_i32, %arg0 : i32, i32
  }
  func.func @transform_3(%arg0: i32, %arg1: i32) -> (i32, i32) {
    %c0_i32 = arith.constant 0 : i32
    return %arg1, %arg0 : i32, i32
  }
}

</mosaic_0001>

<llo_original>
// kernel: tpu_custom_call.1
$region0: #{tpu_custom_call.1}
  #allocation0 [shape = 'u32[]', space=smem, size = 0x4, offset = 0x4, fixed_abs, tag = 'smem constant byte address 0x4 - core index']
  #allocation1 [shape = 'u32[72,128]{1,0:T(1,128)}', space=vmem, size = 0x9000, scoped, tag = 'internal scratch']
  %s0 = inlined_call_operand.vmem [shape: f32[24,16], index: 0, kind: input, shape index: {}]
  %s1 = inlined_call_operand.vmem [shape: f32[16,128], index: 1, kind: input, shape index: {}]
  %s2 = inlined_call_operand.vmem [shape: f32[1,128], index: 2, kind: input, shape index: {}]
  %s3 = inlined_call_operand.hbm [shape: f32[24,128], index: 3, kind: output, shape index: {}]
  %s4 = sld [smem:[#allocation0]]
  $region45: #{tpu_custom_call.1} parent=0
    _
  %s6 = ssub.s32 1, %s4
  %s7 = scalar_select 0, %s6, %s4
  $region1: #{tpu_custom_call.1} parent=0
    #allocation2 [shape = 'u8[8192]{0}', space=vmem, size = 0x2000, scoped, tag = 'output window, operand 0']
    #allocation3 [shape = 's32[2]{0}', space=sflag, size = 0x8, scoped, tag = 'scoped memory for tpu_custom_call.1']
    %8 = vsyncpa [#allocation3], 0
    %s9 = scalar_lea.sflag [#allocation3], 1
    %10 = vsyncpa %s9, 0
    loop: start=0, step=1, limit=5
    $region2: #{tpu_custom_call.1} parent=1 // loop_pre_header
      _
    $region3: #{tpu_custom_call.1} parent=1 // loop_header
      %s12 = sphi 0, %s16
      %p13 = scmp.ge.s32.totalorder %s12, 5
      %s19 = sphi 0, %s31
      %s20 = sphi 0, %s27
      %s21 = sphi 0, %s19
      %s22 = sphi 0, %s20
      %s23 = sphi 0, %s21
      %s24 = sphi 0, %s22
      %s34 = sphi 0, %s36
      %s37 = sphi 0, %s34
      %s38 = sphi 0, %s37
      %s54 = sphi 0, %s38
      %s60 = sphi 0, %s62
      %s63 = sphi 0, %s60
      %s64 = sphi 0, %s63
      %s80 = sphi 0, %s64
      %s86 = sphi 0, %s88
      %s89 = sphi 0, %s86
      %s90 = sphi 0, %s89
      %s106 = sphi 0, %s90
      %s114 = sphi 0, %s116
      %s117 = sphi 0, %s114
      %s118 = sphi 0, %s117
      %s134 = sphi 0, %s118
    $region4: #{tpu_custom_call.1} parent=1 // loop_header_branch
      %15 = sbr.rel (%p13) target = $region8
    $region5: #{tpu_custom_call.1} parent=1 // loop_body
      %s17 = ssub.s32 %s12, 1
      %s18 = ssub.s32 %s12, 2
      %s25 = sadd.s32 1, %s20
      %p26 = scmp.ge.s32.totalorder %s25, 3
      %s27 = scalar_select %p26, 0, %s25
      %s28 = sadd.s32 1, %s19
      %s29 = scalar_select %p26, %s28, %s19
      %p30 = scmp.ge.s32.totalorder %s29, 1
      %s31 = scalar_select %p30, 0, %s29
      %s32 = ssub.s32 %s20, %s27
      %p33 = scmp.eq.s32.totalorder %s32, 0
      %s35 = sadd.s32 %s34, 1
      %s36 = scalar_select %p33, %s34, %s35
      %p39 = pneg %p33
      %p40 = scmp.eq.s32.totalorder %s12, 2
      %p41 = por %p39, %p40
      %p42 = scmp.ne.s32.totalorder %s34, %s37
      %p43 = scmp.eq.s32.totalorder %s12, 0
      %p44 = por %p42, %p43
      %p45 = scmp.ne.s32.totalorder %s34, %s37
      %p46 = scmp.eq.s32.totalorder %s17, 2
      %p47 = por %p45, %p46
      %p48 = scmp.ne.s32.totalorder %s37, %s38
      %p49 = scmp.eq.s32.totalorder %s17, 0
      %p50 = por %p48, %p49
      %p51 = scmp.ne.s32.totalorder %s37, %s38
      %p52 = scmp.eq.s32.totalorder %s18, 2
      %p53 = por %p51, %p52
      %p55 = scmp.ne.s32.totalorder %s38, %s54
      %p56 = scmp.eq.s32.totalorder %s18, 0
      %p57 = por %p55, %p56
      %s58 = ssub.s32 %s19, %s31
      %p59 = scmp.eq.s32.totalorder %s58, 0
      %s61 = sadd.s32 %s60, 1
      %s62 = scalar_select %p59, %s60, %s61
      %p65 = pneg %p59
      %p66 = scmp.eq.s32.totalorder %s12, 2
      %p67 = por %p65, %p66
      %p68 = scmp.ne.s32.totalorder %s60, %s63
      %p69 = scmp.eq.s32.totalorder %s12, 0
      %p70 = por %p68, %p69
      %p71 = scmp.ne.s32.totalorder %s60, %s63
      %p72 = scmp.eq.s32.totalorder %s17, 2
      %p73 = por %p71, %p72
      %p74 = scmp.ne.s32.totalorder %s63, %s64
      %p75 = scmp.eq.s32.totalorder %s17, 0
      %p76 = por %p74, %p75
      %p77 = scmp.ne.s32.totalorder %s63, %s64
      %p78 = scmp.eq.s32.totalorder %s18, 2
      %p79 = por %p77, %p78
      %p81 = scmp.ne.s32.totalorder %s64, %s80
      %p82 = scmp.eq.s32.totalorder %s18, 0
      %p83 = por %p81, %p82
      %s84 = ssub.s32 %s19, %s31
      %p85 = scmp.eq.s32.totalorder %s84, 0
      %s87 = sadd.s32 %s86, 1
      %s88 = scalar_select %p85, %s86, %s87
      %p91 = pneg %p85
      %p92 = scmp.eq.s32.totalorder %s12, 2
      %p93 = por %p91, %p92
      %p94 = scmp.ne.s32.totalorder %s86, %s89
      %p95 = scmp.eq.s32.totalorder %s12, 0
      %p96 = por %p94, %p95
      %p97 = scmp.ne.s32.totalorder %s86, %s89
      %p98 = scmp.eq.s32.totalorder %s17, 2
      %p99 = por %p97, %p98
      %p100 = scmp.ne.s32.totalorder %s89, %s90
      %p101 = scmp.eq.s32.totalorder %s17, 0
      %p102 = por %p100, %p101
      %p103 = scmp.ne.s32.totalorder %s89, %s90
      %p104 = scmp.eq.s32.totalorder %s18, 2
      %p105 = por %p103, %p104
      %p107 = scmp.ne.s32.totalorder %s90, %s106
      %p108 = scmp.eq.s32.totalorder %s18, 0
      %p109 = por %p107, %p108
      %s110 = ssub.s32 %s20, %s27
      %s111 = ssub.s32 %s19, %s31
      %s112 = sor.u32 %s110, %s111
      %p113 = scmp.eq.s32.totalorder %s112, 0
      %s115 = sadd.s32 %s114, 1
      %s116 = scalar_select %p113, %s114, %s115
      %p119 = pneg %p113
      %p120 = scmp.eq.s32.totalorder %s12, 2
      %p121 = por %p119, %p120
      %p122 = scmp.ne.s32.totalorder %s114, %s117
      %p123 = scmp.eq.s32.totalorder %s12, 0
      %p124 = por %p122, %p123
      %p125 = scmp.ne.s32.totalorder %s114, %s117
      %p126 = scmp.eq.s32.totalorder %s17, 2
      %p127 = por %p125, %p126
      %p128 = scmp.ne.s32.totalorder %s117, %s118
      %p129 = scmp.eq.s32.totalorder %s17, 0
      %p130 = por %p128, %p129
      %p131 = scmp.ne.s32.totalorder %s117, %s118
      %p132 = scmp.eq.s32.totalorder %s18, 2
      %p133 = por %p131, %p132
      %p135 = scmp.ne.s32.totalorder %s118, %s134
      %p136 = scmp.eq.s32.totalorder %s18, 0
      %p137 = por %p135, %p136
      %p138 = scmp.le.s32.totalorder 1, %s12
      %p139 = scmp.lt.s32.totalorder %s12, 4
      %p140 = pnand %p138, %p139
      %p141 = pneg %p140
      // Predicated region
      $region9: #{tpu_custom_call.1} parent=5 // pred_check
        _
      $region10: #{tpu_custom_call.1} parent=5 // pred_check_branch
        %143 = sbr.rel (%p140) target = $region12
      $region11: #{tpu_custom_call.1} parent=5 // pred_region
        %s144 = ssub.s32 %s12, 1
        // Predicated region
        $region13: #{tpu_custom_call.1} parent=11 // pred_check
          %p145 = pneg %p76
        $region14: #{tpu_custom_call.1} parent=11 // pred_check_branch
          %147 = sbr.rel (%p145) target = $region16
        $region15: #{tpu_custom_call.1} parent=11 // pred_region
          %p148 = scmp.lt.s32.totalorder %s21, 0
          %s149 = scalar_select %p148, %s21, 0
          %s150 = smul.addr %s149, 8
          %s151 = scalar_lea.vmem %s1, %s150
        $region16: #{tpu_custom_call.1} parent=11 // pred_fallthru
          _
        // Predicated region
        $region17: #{tpu_custom_call.1} parent=11 // pred_check
          %p152 = pneg %p102
        $region18: #{tpu_custom_call.1} parent=11 // pred_check_branch
          %154 = sbr.rel (%p152) target = $region20
        $region19: #{tpu_custom_call.1} parent=11 // pred_region
          %p155 = scmp.lt.s32.totalorder %s21, 0
          %s156 = scalar_select %p155, %s21, 0
          %s157 = scalar_lea.vmem %s2, %s156
        $region20: #{tpu_custom_call.1} parent=11 // pred_fallthru
          _
      $region12: #{tpu_custom_call.1} parent=5 // pred_fallthru
        _
      %p158 = scmp.lt.s32.totalorder %s12, 3
      // Predicated region
      $region21: #{tpu_custom_call.1} parent=5 // pred_check
        %p159 = pneg %p158
      $region22: #{tpu_custom_call.1} parent=5 // pred_check_branch
        %161 = sbr.rel (%p159) target = $region24
      $region23: #{tpu_custom_call.1} parent=5 // pred_region
        // Predicated region
        $region25: #{tpu_custom_call.1} parent=23 // pred_check
          %p162 = pneg %p44
        $region26: #{tpu_custom_call.1} parent=23 // pred_check_branch
          %164 = sbr.rel (%p162) target = $region28
        $region27: #{tpu_custom_call.1} parent=23 // pred_region
          %p165 = scmp.lt.s32.totalorder %s20, 2
          %s166 = scalar_select %p165, %s20, 2
          %s167 = smul.addr %s166, 8
          %s168 = scalar_lea.vmem %s0, %s167
        $region28: #{tpu_custom_call.1} parent=23 // pred_fallthru
          _
      $region24: #{tpu_custom_call.1} parent=5 // pred_fallthru
        _
      %p169 = scmp.le.s32.totalorder 1, %s12
      %p170 = scmp.lt.s32.totalorder %s12, 4
      %p171 = pnand %p169, %p170
      %p172 = pneg %p171
      // Predicated region
      $region29: #{tpu_custom_call.1} parent=5 // pred_check
        _
      $region30: #{tpu_custom_call.1} parent=5 // pred_check_branch
        %174 = sbr.rel (%p171) target = $region32
      $region31: #{tpu_custom_call.1} parent=5 // pred_region
        %s175 = ssub.s32 %s12, 1
        %p176 = scmp.lt.s32.totalorder %s22, 2
        %s177 = scalar_select %p176, %s22, 2
        %s178 = smul.addr %s177, 8
        %s179 = scalar_lea.vmem %s0, %s178
        %p180 = pneg %p50
        %p181 = pneg %p47
        %p182 = scmp.lt.s32.totalorder %s21, 0
        %s183 = scalar_select %p182, %s21, 0
        %s184 = smul.addr %s183, 8
        %s185 = scalar_lea.vmem %s1, %s184
        %p186 = pneg %p76
        %p187 = pneg %p73
        %p188 = scmp.lt.s32.totalorder %s21, 0
        %s189 = scalar_select %p188, %s21, 0
        %s190 = scalar_lea.vmem %s2, %s189
        %p191 = pneg %p102
        %p192 = pneg %p99
        %p193 = pneg %p130
        %p194 = pneg %p127
        %s195 = sand.u32 %s117, 1
        %s196 = scalar_lea.sflag [#allocation3], %s195
        %s197 = sand.u32 %s117, 1
        %s198 = smul.addr %s197, 8
        %s199 = scalar_lea.vmem [#allocation2], %s198
        %p200 = scmp.lt.s32.totalorder %s22, 2
        %s201 = scalar_select %p200, %s22, 2
        %s202 = smul.addr %s201, 8
        %s203 = scalar_lea.vmem %s0, %s202
        %p204 = scmp.lt.s32.totalorder %s21, 0
        %s205 = scalar_select %p204, %s21, 0
        %s206 = smul.addr %s205, 8
        %s207 = scalar_lea.vmem %s1, %s206
        %p208 = scmp.lt.s32.totalorder %s21, 0
        %s209 = scalar_select %p208, %s21, 0
        %s210 = scalar_lea.vmem %s2, %s209
        %v211 = vld [vmem:[%s203] sm:$0xff]
        %v212 = vld [vmem:[%s207] sm:$0xff]
        %v213 = vld [vmem:[%s207 + $0x8] sm:$0xff]
        %v214 = vld [vmem:[%s210] sm:$0x1]
        %v216 = vperm.slane %v214, 0
        %vm218 = vcmask 130048
        %v220 = vsel %vm218, %v211, 0
        %222 = vmatpush.msra.mxu0 0.0
        %223 = vmatpush.msra.mxu0 0.0
        %224 = vmatpush.msra.mxu0 0.0
        %225 = vmatpush.msra.mxu0 0.0
        %226 = vmatpush.msra.mxu0 0.0
        %227 = vmatpush.msra.mxu0 0.0
        %228 = vmatpush.msra.mxu0 0.0
        %229 = vmatpush.msra.mxu0 0.0
        %230 = vmatpush.msra.mxu0 0.0
        %231 = vmatpush.msra.mxu0 0.0
        %232 = vmatpush.msra.mxu0 0.0
        %233 = vmatpush.msra.mxu0 0.0
        %234 = vmatpush.msra.mxu0 0.0
        %235 = vmatpush.msra.mxu0 0.0
        %236 = vmatpush.msra.mxu0 %v213
        %237 = vmatpush.msra.mxu0 %v212
        %238 = vmatmul.f32.gmra.mxu0 %v220
        %v239 = vpop.f32.mrf.mxu0
        %v240 = vadd.f32 %v216, %v239
        %241 = vdwg.mxu0
        %v242 = vmul.f32 %v240, 0.2
        %v243 = vmax.f32 %v240, %v242
        %244 = vst [vmem:[%s199] sm:$0xff] %v243
        %s245 = sand.u32 %s117, 1
        %s246 = scalar_lea.sflag [#allocation3], %s245
        %s247 = sand.u32 %s117, 1
        %s248 = smul.addr %s247, 8
        %s249 = scalar_lea.vmem [#allocation2], %s248
        // Predicated region
        $region33: #{tpu_custom_call.1} parent=31 // pred_check
          %p250 = pneg %p127
        $region34: #{tpu_custom_call.1} parent=31 // pred_check_branch
          %252 = sbr.rel (%p250) target = $region36
        $region35: #{tpu_custom_call.1} parent=31 // pred_region
          %254 = vsyncadd %s246, 0
          %s255 = sadd.s32 %s21, %s22
          %s256 = smul.addr %s255, 8
          %s257 = scalar_lea.hbm %s3, %s256
          %s259 = sshll.u32 %s249, 4
          %s260 = int_to_ptr.vmem [resolvable:$true] %s259
          %s261 = sshll.u32 %s257, 4
          %s262 = int_to_ptr.hbm [resolvable:$true] %s261
          %264 = dma.vmem_to_hbm [thread:$0]  %s260, 128, %s262, %s246
        $region36: #{tpu_custom_call.1} parent=31 // pred_fallthru
          _
      $region32: #{tpu_custom_call.1} parent=5 // pred_fallthru
        _
      %p265 = scmp.le.s32.totalorder 2, %s12
      // Predicated region
      $region37: #{tpu_custom_call.1} parent=5 // pred_check
        %p266 = pneg %p265
      $region38: #{tpu_custom_call.1} parent=5 // pred_check_branch
        %268 = sbr.rel (%p266) target = $region40
      $region39: #{tpu_custom_call.1} parent=5 // pred_region
        %s269 = ssub.s32 %s12, 2
        // Predicated region
        $region41: #{tpu_custom_call.1} parent=39 // pred_check
          %p270 = pneg %p133
        $region42: #{tpu_custom_call.1} parent=39 // pred_check_branch
          %272 = sbr.rel (%p270) target = $region44
        $region43: #{tpu_custom_call.1} parent=39 // pred_region
          %s273 = sand.u32 %s118, 1
          %s274 = scalar_lea.sflag [#allocation3], %s273
          %s275 = sand.u32 %s118, 1
          %s276 = smul.addr %s275, 8
          %s277 = scalar_lea.vmem [#allocation2], %s276
          %279 = dma.done %s274, 128
        $region44: #{tpu_custom_call.1} parent=39 // pred_fallthru
          _
      $region40: #{tpu_custom_call.1} parent=5 // pred_fallthru
        _
    $region6: #{tpu_custom_call.1} parent=1 // loop_footer
      %s16 = sadd.s32 1, %s12
    $region7: #{tpu_custom_call.1} parent=1 // loop_footer_branch
      %11 = sbr.rel target = $region3
    $region8: #{tpu_custom_call.1} parent=1 // loop_exit
      _
    %280 = vsyncpa [#allocation3], 1
    %s281 = scalar_lea.sflag [#allocation3], 1
    %282 = vsyncpa %s281, 1

</llo_original>
